<compile_context>
chip_gen: v7x
topology: tpu7x:2x2x1
jax: 0.10.0
libtpu: 0.0.40
codegen_flags: <defaults>
</compile_context>

<pallas_src>
import jax
import jax.numpy as jnp
import numpy as np
from jax.experimental import pallas as pl
from jax.experimental.pallas import tpu as pltpu

HEAD_VERTEX = 331
FACE_VERTICES = (3899, 6244, 2784, 220)
_GATHER_IDS = (HEAD_VERTEX,) + FACE_VERTICES  # the 5 vertex rows the op actually reads


def _to_openpose_kernel(j_ref, v_ref, o_ref):
    # j_ref: (TB, J*3)      batch on sublanes, joint*3+coord on lanes
    # v_ref: (TB, 15)       lanes 0:3 = vertex 331 (head), lanes 3:15 = face vertices
    # o_ref: (TB, (J+4)*3)
    od = o_ref.dtype
    nj = j_ref.shape[1]  # J*3 (static)

    # Bulk copy of all joint lanes at identical lane offsets (no relayout, no cast
    # for pass-through rows), then patch the few lanes that change.
    o_ref[:, 0:nj] = j_ref[...]

    # Means in f32 (matches the fp32 torch reference); only the 18 feeding lanes
    # are loaded/upcast, so the full block is never held live in f32 registers.
    head9 = j_ref[:, 0:9].astype(jnp.float32)
    neck9 = j_ref[:, 36:45].astype(jnp.float32)
    pelvis = (head9[:, 0:3] + head9[:, 3:6] + head9[:, 6:9]) / jnp.float32(3.0)
    neck = (neck9[:, 0:3] + neck9[:, 3:6] + neck9[:, 6:9]) / jnp.float32(3.0)

    o_ref[:, 0:3] = pelvis.astype(od)                   # joint 0  <- pelvis mean
    o_ref[:, 36:39] = neck.astype(od)                   # joint 12 <- neck mean
    o_ref[:, 45:48] = v_ref[:, 0:3].astype(od)          # joint 15 <- vertex 331
    o_ref[:, nj:nj + 12] = v_ref[:, 3:15].astype(od)    # 4 face vertices (one store)


def _batch_tile(B: int) -> int:
    """Batch rows per block: full batch when tiny, else >=4 blocks (v7x's two
    TensorCores both get work) with large tiles to amortize per-step overhead."""
    if B <= 32:
        return B  # single full-dim block (always a legal block shape)
    tb = -(-B // 4)                      # cdiv(B, 4)
    tb = ((tb + 7) // 8) * 8             # sublane-aligned
    return min(4096, tb)                 # ~13 MB double-buffered VMEM worst case


def to_openpose(joints: jax.Array, vertices: jax.Array) -> jax.Array:
    """joints: (B, J, 3) with J >= 16; vertices: (B, V, 3) with V > 6244."""
    B, J, C = joints.shape
    _, V, _ = vertices.shape
    assert C == 3 and J >= 16 and V > max(_GATHER_IDS)

    # Gather only the 5 needed vertex rows wrapper-side (60 B/batch).
    vsel = jnp.take(vertices, jnp.asarray(_GATHER_IDS, dtype=jnp.int32), axis=1)

    # Natural layout; these reshapes are metadata-only (no HBM copies).
    j2 = joints.reshape(B, J * C)        # (B, 72)
    v2 = vsel.reshape(B, 5 * C)          # (B, 15)
    out_cols = (J + 4) * C               # 84 for STAR

    tb = _batch_tile(B)
    grid = (pl.cdiv(B, tb),)             # ragged last block handled by Pallas masking

    out2 = pl.pallas_call(
        _to_openpose_kernel,
        out_shape=jax.ShapeDtypeStruct((B, out_cols), joints.dtype),
        grid=grid,
        in_specs=[
            pl.BlockSpec((tb, J * C), lambda b: (b, 0)),
            pl.BlockSpec((tb, 5 * C), lambda b: (b, 0)),
        ],
        out_specs=pl.BlockSpec((tb, out_cols), lambda b: (b, 0)),
        compiler_params=pltpu.CompilerParams(
            dimension_semantics=("parallel",),  # batch tiles split across v7x's two TCs
        ),
    )(j2, v2)

    return out2.reshape(B, J + 4, C)


def _reference(joints: np.ndarray, vertices: np.ndarray) -> np.ndarray:
    j = joints.copy()
    j[:, 12, :] = joints[:, 12:15, :].mean(axis=1)
    j[:, 0, :] = joints[:, 0:3, :].mean(axis=1)
    j[:, 15, :] = vertices[:, HEAD_VERTEX, :]
    face = vertices[:, list(FACE_VERTICES), :]
    return np.concatenate([j, face], axis=1)


if __name__ == "__main__":
    # The module has no learnable parameters; only deterministic inputs are needed.
    J, V = 24, 6890  # STAR: 24 joints, 6890 vertices (indices up to 6244 used)
    fn = jax.jit(to_openpose)

    key = jax.random.PRNGKey(0)
    for B in (2, 37):  # small batch + a batch exercising multi-block / ragged tiling
        key, kj, kv = jax.random.split(key, 3)
        joints = jax.random.normal(kj, (B, J, 3), dtype=jnp.float32)
        vertices = jax.random.normal(kv, (B, V, 3), dtype=jnp.float32)

        out = jax.block_until_ready(fn(joints, vertices))

        ref = _reference(np.asarray(joints), np.asarray(vertices))
        np.testing.assert_allclose(np.asarray(out), ref, rtol=1e-6, atol=1e-6)

    print("KERNEL_OK")
</pallas_src>

<mosaic_0001>
module attributes {stable_mosaic.version = 11 : i64} {
  func.func @_to_openpose_kernel(%arg0: i32, %arg1: memref<2x72xf32, #tpu.memory_space<vmem>>, %arg2: memref<2x15xf32, #tpu.memory_space<vmem>>, %arg3: memref<2x84xf32, #tpu.memory_space<vmem>>) attributes {dimension_semantics = [#tpu.dimension_semantics<parallel>], iteration_bounds = array<i64: 1>, scalar_prefetch = 0 : i64, scratch_operands = 0 : i64, tpu.core_type = #tpu.core_type<tc>, window_params = [{transform_indices = @transform_0, window_bounds = array<i64: 2, 72>}, {transform_indices = @transform_1, window_bounds = array<i64: 2, 15>}, {transform_indices = @transform_2, window_bounds = array<i64: 2, 84>}]} {
    %c0 = arith.constant 0 : index
    %c0_0 = arith.constant 0 : index
    %0 = vector.load %arg1[%c0, %c0_0] : memref<2x72xf32, #tpu.memory_space<vmem>>, vector<2x72xf32>
    %c0_1 = arith.constant 0 : index
    %c0_2 = arith.constant 0 : index
    %1 = vector.load %arg3[%c0_1, %c0_2] : memref<2x84xf32, #tpu.memory_space<vmem>>, vector<2x72xf32>
    tpu.vector_store %arg3[%c0_1, %c0_2], %0 {strides = array<i32>} : memref<2x84xf32, #tpu.memory_space<vmem>>, vector<2x72xf32>,
    %c0_3 = arith.constant 0 : index
    %c0_4 = arith.constant 0 : index
    %2 = vector.load %arg1[%c0_3, %c0_4] : memref<2x72xf32, #tpu.memory_space<vmem>>, vector<2x9xf32>
    %c0_5 = arith.constant 0 : index
    %c36 = arith.constant 36 : index
    %3 = vector.load %arg1[%c0_5, %c36] : memref<2x72xf32, #tpu.memory_space<vmem>>, vector<2x9xf32>
    %4 = vector.extract_strided_slice %2 {offsets = [0, 0], sizes = [2, 3], strides = [1, 1]} : vector<2x9xf32> to vector<2x3xf32>
    %5 = vector.extract_strided_slice %2 {offsets = [0, 3], sizes = [2, 3], strides = [1, 1]} : vector<2x9xf32> to vector<2x3xf32>
    %6 = arith.addf %4, %5 : vector<2x3xf32>
    %7 = vector.extract_strided_slice %2 {offsets = [0, 6], sizes = [2, 3], strides = [1, 1]} : vector<2x9xf32> to vector<2x3xf32>
    %8 = arith.addf %6, %7 : vector<2x3xf32>
    %cst = arith.constant 3.000000e+00 : f32
    %9 = vector.broadcast %cst : f32 to vector<2x3xf32>
    %10 = arith.divf %8, %9 : vector<2x3xf32>
    %11 = vector.extract_strided_slice %3 {offsets = [0, 0], sizes = [2, 3], strides = [1, 1]} : vector<2x9xf32> to vector<2x3xf32>
    %12 = vector.extract_strided_slice %3 {offsets = [0, 3], sizes = [2, 3], strides = [1, 1]} : vector<2x9xf32> to vector<2x3xf32>
    %13 = arith.addf %11, %12 : vector<2x3xf32>
    %14 = vector.extract_strided_slice %3 {offsets = [0, 6], sizes = [2, 3], strides = [1, 1]} : vector<2x9xf32> to vector<2x3xf32>
    %15 = arith.addf %13, %14 : vector<2x3xf32>
    %cst_6 = arith.constant 3.000000e+00 : f32
    %16 = vector.broadcast %cst_6 : f32 to vector<2x3xf32>
    %17 = arith.divf %15, %16 : vector<2x3xf32>
    %c0_7 = arith.constant 0 : index
    %c0_8 = arith.constant 0 : index
    %18 = vector.load %arg3[%c0_7, %c0_8] : memref<2x84xf32, #tpu.memory_space<vmem>>, vector<2x3xf32>
    tpu.vector_store %arg3[%c0_7, %c0_8], %10 {strides = array<i32>} : memref<2x84xf32, #tpu.memory_space<vmem>>, vector<2x3xf32>,
    %c0_9 = arith.constant 0 : index
    %c36_10 = arith.constant 36 : index
    %19 = vector.load %arg3[%c0_9, %c36_10] : memref<2x84xf32, #tpu.memory_space<vmem>>, vector<2x3xf32>
    tpu.vector_store %arg3[%c0_9, %c36_10], %17 {strides = array<i32>} : memref<2x84xf32, #tpu.memory_space<vmem>>, vector<2x3xf32>,
    %c0_11 = arith.constant 0 : index
    %c0_12 = arith.constant 0 : index
    %20 = vector.load %arg2[%c0_11, %c0_12] : memref<2x15xf32, #tpu.memory_space<vmem>>, vector<2x3xf32>
    %c0_13 = arith.constant 0 : index
    %c45 = arith.constant 45 : index
    %21 = vector.load %arg3[%c0_13, %c45] : memref<2x84xf32, #tpu.memory_space<vmem>>, vector<2x3xf32>
    tpu.vector_store %arg3[%c0_13, %c45], %20 {strides = array<i32>} : memref<2x84xf32, #tpu.memory_space<vmem>>, vector<2x3xf32>,
    %c0_14 = arith.constant 0 : index
    %c3 = arith.constant 3 : index
    %22 = vector.load %arg2[%c0_14, %c3] : memref<2x15xf32, #tpu.memory_space<vmem>>, vector<2x12xf32>
    %c0_15 = arith.constant 0 : index
    %c72 = arith.constant 72 : index
    %23 = vector.load %arg3[%c0_15, %c72] : memref<2x84xf32, #tpu.memory_space<vmem>>, vector<2x12xf32>
    tpu.vector_store %arg3[%c0_15, %c72], %22 {strides = array<i32>} : memref<2x84xf32, #tpu.memory_space<vmem>>, vector<2x12xf32>,
    return
  }
  func.func @transform_0(%arg0: i32) -> (i32, i32) {
    %c0_i32 = arith.constant 0 : i32
    %c0_i32_0 = arith.constant 0 : i32
    return %arg0, %c0_i32 : i32, i32
  }
  func.func @transform_1(%arg0: i32) -> (i32, i32) {
    %c0_i32 = arith.constant 0 : i32
    %c0_i32_0 = arith.constant 0 : i32
    return %arg0, %c0_i32 : i32, i32
  }
  func.func @transform_2(%arg0: i32) -> (i32, i32) {
    %c0_i32 = arith.constant 0 : i32
    %c0_i32_0 = arith.constant 0 : i32
    return %arg0, %c0_i32 : i32, i32
  }
}

</mosaic_0001>

<llo_original>
// kernel: to_openpose.1
$region0: #{to_openpose.1}
  #allocation0 [shape = 'u32[]', space=smem, size = 0x4, offset = 0x4, fixed_abs, tag = 'smem constant byte address 0x4 - core index']
  #allocation1 [shape = 'u32[144,128]{1,0:T(1,128)}', space=vmem, size = 0x12000, scoped, tag = 'internal scratch']
  %s0 = inlined_call_operand.vmem [shape: f32[2,72], index: 0, kind: input, shape index: {}]
  %s1 = inlined_call_operand.vmem [shape: f32[2,15], index: 1, kind: input, shape index: {}]
  %s2 = inlined_call_operand.vmem [shape: f32[2,84], index: 2, kind: output, shape index: {}]
  %s3 = sld [smem:[#allocation0]]
  $region18: #{to_openpose.1} parent=0
    _
  %s5 = ssub.s32 1, %s3
  %s6 = scalar_select 0, %s5, %s3
  // Predicated region
  $region2: #{to_openpose.1} parent=0 // pred_check
    _
  $region3: #{to_openpose.1} parent=0 // pred_check_branch
    %8 = sbr.rel (0) target = $region5
  $region4: #{to_openpose.1} parent=0 // pred_region
    _
  $region5: #{to_openpose.1} parent=0 // pred_fallthru
    _
  // Predicated region
  $region6: #{to_openpose.1} parent=0 // pred_check
    _
  $region7: #{to_openpose.1} parent=0 // pred_check_branch
    %10 = sbr.rel (0) target = $region9
  $region8: #{to_openpose.1} parent=0 // pred_region
    _
  $region9: #{to_openpose.1} parent=0 // pred_fallthru
    _
  %v11 = vld [vmem:[%s0] sm:$0x3]
  %vm12 = vcmask 582656
  %13 = vst.msk [vmem:[%s2] sm:$0x3] %vm12, %v11
  %v14 = vld [vmem:[%s0] sm:$0x3]
  %16 = vrot.lane.b32.xlu0 %v14, 125
  %v17 = vpop.permute.xlu0 %16
  %v19 = vadd.f32 %v14, %v17
  %20 = vrot.lane.b32.xlu0 %v14, 122
  %v21 = vpop.permute.xlu0 %20
  %v23 = vadd.f32 %v19, %v21
  %v24 = vrcp.pop 3.0
  %v25 = vmul.f32 %v23, %v24
  %vm26 = vcmask 17408
  %27 = vst.msk [vmem:[%s2] sm:$0x3] %vm26, %v25
  %vm28 = vcmask 312608
  %29 = vst.msk [vmem:[%s2] sm:$0x3] %vm28, %v25
  %v30 = vld [vmem:[%s1] sm:$0x3]
  %32 = vrot.lane.b32.xlu0 %v30, 45
  %v33 = vpop.permute.xlu0 %32
  %vm35 = vcmask 386408
  %36 = vst.msk [vmem:[%s2] sm:$0x3] %vm35, %v33
  %v37 = vld [vmem:[%s1] sm:$0x3]
  %39 = vrot.lane.b32.xlu0 %v37, 69
  %v40 = vpop.permute.xlu0 %39
  %vm42 = vcmask 681536
  %43 = vst.msk [vmem:[%s2] sm:$0x3] %vm42, %v40
  // Predicated region
  $region10: #{to_openpose.1} parent=0 // pred_check
    _
  $region11: #{to_openpose.1} parent=0 // pred_check_branch
    %45 = sbr.rel (0) target = $region13
  $region12: #{to_openpose.1} parent=0 // pred_region
    _
  $region13: #{to_openpose.1} parent=0 // pred_fallthru
    _
  // Predicated region
  $region14: #{to_openpose.1} parent=0 // pred_check
    _
  $region15: #{to_openpose.1} parent=0 // pred_check_branch
    %47 = sbr.rel (0) target = $region17
  $region16: #{to_openpose.1} parent=0 // pred_region
    _
  $region17: #{to_openpose.1} parent=0 // pred_fallthru
    _

</llo_original>
